<compile_context>
chip_gen: v7x
topology: tpu7x:2x2x1
jax: 0.10.0
libtpu: 0.0.40
codegen_flags: <defaults>
</compile_context>

<pallas_src>
import numpy as np

import jax
import jax.numpy as jnp
from jax.experimental import pallas as pl
from jax.experimental.pallas import tpu as pltpu


def fancy_mlp_kernel(x_ref, w_ref, b_ref, out_ref):
    """x_ref: (N,20) f32.  w_ref: (2,20,20) f32 = [W.T @ rw, W.T].
    b_ref: (2,20) f32 = [b @ rw + 1, b].  out_ref: (1,1) f32."""
    x = x_ref[...]

    # Layer 1 fused with the rand_weight matmul (fold precomputed on host):
    #   relu((x @ W.T + b) @ rw + 1) == relu(x @ (W.T @ rw) + (b @ rw + 1))
    h = jnp.dot(x, w_ref[0], preferred_element_type=jnp.float32) + b_ref[0:1, :]
    h = jnp.maximum(h, 0.0)

    # Shared Linear applied again: h @ W.T + b  (W.T supplied pre-transposed,
    # so this is a plain row-major dot — no in-kernel relayout).
    h = jnp.dot(h, w_ref[1], preferred_element_type=jnp.float32) + b_ref[1:2, :]

    # while ||h|| > 1: h /= 2
    # k = smallest integer >= 0 with 4**k >= ||h||^2, read straight off the
    # f32 exponent field. Exact; no log2/exp2 transcendentals. s == 0 or
    # denormal s -> biased exponent 0 -> e_unb < 0 -> k = 0.
    s = jnp.sum(h * h, keepdims=True)                       # (1,1)  ||h||^2 >= 0
    bits = pltpu.bitcast(s, jnp.int32)                      # sign bit is 0
    e_unb = ((bits >> 23) & 0xFF) - 127                     # floor(log2(s)) for normal s
    frac_nz = (bits & 0x7FFFFF) != 0
    k_pos = (e_unb >> 1) + jnp.where(((e_unb & 1) != 0) | frac_nz, 1, 0)
    k = jnp.where(e_unb < 0, 0, k_pos)
    scale = pltpu.bitcast((127 - k) << 23, jnp.float32)     # == 2.0**-k, exact

    # if ||h / 2**k|| < 0.8: h *= 10   (compared on squared norms; can differ
    # from the spec's sqrt-based compare only within ~1 ulp of the threshold).
    s_after = s * scale * scale                             # exact pow2 scaling
    scale = jnp.where(s_after < 0.64, scale * 10.0, scale)

    # return h.sum() — power-of-two scaling distributes exactly over the sum.
    out_ref[...] = jnp.sum(h, keepdims=True) * scale


def fold_params(w, b, rand_weight):
    """One-time fold of the static parameters. Run this when the weights are
    set, NOT on the per-call dispatch path.

      W2 = W.T @ rw,  b2 = b @ rw + 1,  and W.T pre-transposed to (in, out),
    packed into one weight array and one bias array (2 entry DMAs)."""
    wt = jnp.transpose(w)                                   # (in, out)
    w2 = jnp.dot(wt, rand_weight)                           # (20, 20)
    b2 = jnp.dot(b, rand_weight) + 1.0                      # (20,)
    w_packed = jnp.stack([w2, wt]).astype(jnp.float32)      # (2, 20, 20)
    b_packed = jnp.stack([b2, b]).astype(jnp.float32)       # (2, 20)
    return w_packed, b_packed


@jax.jit
def fancy_mlp(x, w_packed, b_packed):
    """x: (N, 20) f32; w_packed/b_packed from fold_params (computed once)."""
    vmem = pl.BlockSpec(memory_space=pltpu.MemorySpace.VMEM)
    out = pl.pallas_call(
        fancy_mlp_kernel,
        out_shape=jax.ShapeDtypeStruct((1, 1), jnp.float32),
        in_specs=[vmem, vmem, vmem],
        out_specs=vmem,
    )(x, w_packed, b_packed)
    return out[0, 0]


if __name__ == "__main__":
    key = jax.random.PRNGKey(0)
    k_x, k_w, k_b, k_rw = jax.random.split(key, 4)

    N, F = 2, 20
    x = jax.random.normal(k_x, (N, F), dtype=jnp.float32)

    # nn.Linear(20, 20): weight (out, in), bias (out,) — deterministic init.
    bound = 1.0 / (F ** 0.5)
    w = jax.random.uniform(k_w, (F, F), minval=-bound, maxval=bound,
                           dtype=jnp.float32)
    b = jax.random.uniform(k_b, (F,), minval=-bound, maxval=bound,
                           dtype=jnp.float32)
    # torch.rand((20, 20)): uniform [0, 1)
    rand_weight = jax.random.uniform(k_rw, (F, F), dtype=jnp.float32)

    # One-time parameter fold — hoisted off the per-call dispatch path.
    w_packed, b_packed = jax.block_until_ready(fold_params(w, b, rand_weight))

    result = jax.block_until_ready(fancy_mlp(x, w_packed, b_packed))

    # Reference: the UNFUSED spec in float64 (numpy), with the spec's
    # host-side while/if control flow. Validates the fold itself.
    xf = np.asarray(x, np.float64)
    wf = np.asarray(w, np.float64)
    bf = np.asarray(b, np.float64)
    rwf = np.asarray(rand_weight, np.float64)

    h = xf @ wf.T + bf
    h = np.maximum(h @ rwf + 1.0, 0.0)
    h = h @ wf.T + bf
    while np.linalg.norm(h) > 1.0:
        h = h / 2.0
    if np.linalg.norm(h) < 0.8:
        h = h * 10.0
    ref = float(h.sum())

    assert abs(float(result) - ref) <= 5e-2 * max(1.0, abs(ref)), (float(result), ref)

    print("KERNEL_OK")
</pallas_src>

<mosaic_0001>
module attributes {stable_mosaic.version = 11 : i64} {
  func.func @fancy_mlp_kernel(%arg0: memref<2x20xf32, #tpu.memory_space<vmem>>, %arg1: memref<2x20x20xf32, #tpu.memory_space<vmem>>, %arg2: memref<2x20xf32, #tpu.memory_space<vmem>>, %arg3: memref<1x1xf32, #tpu.memory_space<vmem>>) attributes {dimension_semantics = [], scalar_prefetch = 0 : i64, scratch_operands = 0 : i64, tpu.core_type = #tpu.core_type<tc>} {
    %c0 = arith.constant 0 : index
    %c0_0 = arith.constant 0 : index
    %0 = vector.load %arg0[%c0, %c0_0] : memref<2x20xf32, #tpu.memory_space<vmem>>, vector<2x20xf32>
    %c0_1 = arith.constant 0 : index
    %c0_2 = arith.constant 0 : index
    %c0_3 = arith.constant 0 : index
    %1 = vector.load %arg1[%c0_1, %c0_2, %c0_3] : memref<2x20x20xf32, #tpu.memory_space<vmem>>, vector<1x20x20xf32>
    %2 = vector.shape_cast %1 : vector<1x20x20xf32> to vector<20x20xf32>
    %cst = arith.constant dense<0.000000e+00> : vector<2x20xf32>
    %3 = tpu.matmul %0, %2, %cst {dimension_numbers = #tpu.dot_dimension_numbers<[1], [0], [0], [1], [0, 0, 1, 1], [], []>} : vector<2x20xf32>, vector<20x20xf32>, vector<2x20xf32> -> vector<2x20xf32>
    %c0_4 = arith.constant 0 : index
    %c0_5 = arith.constant 0 : index
    %4 = vector.load %arg2[%c0_4, %c0_5] : memref<2x20xf32, #tpu.memory_space<vmem>>, vector<1x20xf32>
    %5 = vector.broadcast %4 : vector<1x20xf32> to vector<2x20xf32>
    %6 = arith.addf %3, %5 : vector<2x20xf32>
    %cst_6 = arith.constant 0.000000e+00 : f32
    %7 = vector.broadcast %cst_6 : f32 to vector<2x20xf32>
    %8 = arith.maximumf %6, %7 : vector<2x20xf32>
    %c1 = arith.constant 1 : index
    %c0_7 = arith.constant 0 : index
    %c0_8 = arith.constant 0 : index
    %9 = vector.load %arg1[%c1, %c0_7, %c0_8] : memref<2x20x20xf32, #tpu.memory_space<vmem>>, vector<1x20x20xf32>
    %10 = vector.shape_cast %9 : vector<1x20x20xf32> to vector<20x20xf32>
    %cst_9 = arith.constant dense<0.000000e+00> : vector<2x20xf32>
    %11 = tpu.matmul %8, %10, %cst_9 {dimension_numbers = #tpu.dot_dimension_numbers<[1], [0], [0], [1], [0, 0, 1, 1], [], []>} : vector<2x20xf32>, vector<20x20xf32>, vector<2x20xf32> -> vector<2x20xf32>
    %c1_10 = arith.constant 1 : index
    %c0_11 = arith.constant 0 : index
    %12 = vector.load %arg2[%c1_10, %c0_11] : memref<2x20xf32, #tpu.memory_space<vmem>>, vector<1x20xf32>
    %13 = vector.broadcast %12 : vector<1x20xf32> to vector<2x20xf32>
    %14 = arith.addf %11, %13 : vector<2x20xf32>
    %15 = arith.mulf %14, %14 : vector<2x20xf32>
    %16 = vector.shape_cast %15 : vector<2x20xf32> to vector<1x2x20xf32>
    %cst_12 = arith.constant dense<0.000000e+00> : vector<1xf32>
    %17 = vector.multi_reduction <add>, %16, %cst_12 [1, 2] : vector<1x2x20xf32> to vector<1xf32>
    %18 = vector.shape_cast %17 : vector<1xf32> to vector<1x1x1xf32>
    %19 = vector.extract %18[0, 0, 0] : f32 from vector<1x1x1xf32>
    %20 = vector.broadcast %19 : f32 to vector<1x1xf32>
    %21 = tpu.bitcast %20 : vector<1x1xf32> -> vector<1x1xi32>
    %c23_i32 = arith.constant 23 : i32
    %22 = vector.broadcast %c23_i32 : i32 to vector<1x1xi32>
    %23 = arith.shrsi %21, %22 : vector<1x1xi32>
    %c255_i32 = arith.constant 255 : i32
    %24 = vector.broadcast %c255_i32 : i32 to vector<1x1xi32>
    %25 = arith.andi %23, %24 : vector<1x1xi32>
    %c127_i32 = arith.constant 127 : i32
    %26 = vector.broadcast %c127_i32 : i32 to vector<1x1xi32>
    %27 = arith.subi %25, %26 : vector<1x1xi32>
    %c8388607_i32 = arith.constant 8388607 : i32
    %28 = vector.broadcast %c8388607_i32 : i32 to vector<1x1xi32>
    %29 = arith.andi %21, %28 : vector<1x1xi32>
    %c0_i32 = arith.constant 0 : i32
    %30 = vector.broadcast %c0_i32 : i32 to vector<1x1xi32>
    %31 = arith.cmpi ne, %29, %30 : vector<1x1xi32>
    %c1_i32 = arith.constant 1 : i32
    %32 = vector.broadcast %c1_i32 : i32 to vector<1x1xi32>
    %33 = arith.shrsi %27, %32 : vector<1x1xi32>
    %c1_i32_13 = arith.constant 1 : i32
    %34 = vector.broadcast %c1_i32_13 : i32 to vector<1x1xi32>
    %35 = arith.andi %27, %34 : vector<1x1xi32>
    %c0_i32_14 = arith.constant 0 : i32
    %36 = vector.broadcast %c0_i32_14 : i32 to vector<1x1xi32>
    %37 = arith.cmpi ne, %35, %36 : vector<1x1xi32>
    %38 = arith.ori %37, %31 : vector<1x1xi1>
    %c1_i32_15 = arith.constant 1 : i32
    %c0_i32_16 = arith.constant 0 : i32
    %39 = vector.broadcast %c1_i32_15 : i32 to vector<1x1xi32>
    %40 = vector.broadcast %c0_i32_16 : i32 to vector<1x1xi32>
    %41 = arith.select %38, %39, %40 : vector<1x1xi1>, vector<1x1xi32>
    %42 = arith.addi %33, %41 : vector<1x1xi32>
    %c0_i32_17 = arith.constant 0 : i32
    %43 = vector.broadcast %c0_i32_17 : i32 to vector<1x1xi32>
    %44 = arith.cmpi slt, %27, %43 : vector<1x1xi32>
    %c0_i32_18 = arith.constant 0 : i32
    %45 = vector.broadcast %c0_i32_18 : i32 to vector<1x1xi32>
    %46 = arith.select %44, %45, %42 : vector<1x1xi1>, vector<1x1xi32>
    %c127_i32_19 = arith.constant 127 : i32
    %47 = vector.broadcast %c127_i32_19 : i32 to vector<1x1xi32>
    %48 = arith.subi %47, %46 : vector<1x1xi32>
    %c23_i32_20 = arith.constant 23 : i32
    %49 = vector.broadcast %c23_i32_20 : i32 to vector<1x1xi32>
    %50 = arith.shli %48, %49 : vector<1x1xi32>
    %51 = tpu.bitcast %50 : vector<1x1xi32> -> vector<1x1xf32>
    %52 = arith.mulf %20, %51 : vector<1x1xf32>
    %53 = arith.mulf %52, %51 : vector<1x1xf32>
    %cst_21 = arith.constant 6.400000e-01 : f32
    %54 = vector.broadcast %cst_21 : f32 to vector<1x1xf32>
    %55 = arith.cmpf olt, %53, %54 : vector<1x1xf32>
    %cst_22 = arith.constant 1.000000e+01 : f32
    %56 = vector.broadcast %cst_22 : f32 to vector<1x1xf32>
    %57 = arith.mulf %51, %56 : vector<1x1xf32>
    %58 = arith.select %55, %57, %51 : vector<1x1xi1>, vector<1x1xf32>
    %59 = vector.shape_cast %14 : vector<2x20xf32> to vector<1x2x20xf32>
    %cst_23 = arith.constant dense<0.000000e+00> : vector<1xf32>
    %60 = vector.multi_reduction <add>, %59, %cst_23 [1, 2] : vector<1x2x20xf32> to vector<1xf32>
    %61 = vector.shape_cast %60 : vector<1xf32> to vector<1x1x1xf32>
    %62 = vector.extract %61[0, 0, 0] : f32 from vector<1x1x1xf32>
    %63 = vector.broadcast %62 : f32 to vector<1x1xf32>
    %64 = arith.mulf %63, %58 : vector<1x1xf32>
    %c0_24 = arith.constant 0 : index
    %c0_25 = arith.constant 0 : index
    %65 = vector.load %arg3[%c0_24, %c0_25] : memref<1x1xf32, #tpu.memory_space<vmem>>, vector<1x1xf32>
    tpu.vector_store %arg3[%c0_24, %c0_25], %64 {strides = array<i32>} : memref<1x1xf32, #tpu.memory_space<vmem>>, vector<1x1xf32>,
    return
  }
}

</mosaic_0001>

<llo_original>
// kernel: fancy_mlp.1
$region0: #{fancy_mlp.1}
  #allocation0 [shape = 'u32[]', space=smem, size = 0x4, offset = 0x4, fixed_abs, tag = 'smem constant byte address 0x4 - core index']
  #allocation1 [shape = 'u32[144,128]{1,0:T(1,128)}', space=vmem, size = 0x12000, scoped, tag = 'internal scratch']
  %s0 = inlined_call_operand.vmem [shape: f32[2,20], index: 0, kind: input, shape index: {}]
  %s1 = inlined_call_operand.vmem [shape: f32[2,20,20], index: 1, kind: input, shape index: {}]
  %s2 = inlined_call_operand.vmem [shape: f32[2,20], index: 2, kind: input, shape index: {}]
  %s3 = inlined_call_operand.hbm [shape: f32[1,1], index: 3, kind: output, shape index: {}]
  %s4 = sld [smem:[#allocation0]]
  $region22: #{fancy_mlp.1} parent=0
    _
  %s6 = ssub.s32 1, %s4
  %s7 = scalar_select 0, %s6, %s4
  $region1: #{fancy_mlp.1} parent=0
    #allocation2 [shape = 'u8[512]{0}', space=vmem, size = 0x400, scoped, tag = 'output window, operand 0, single buffered']
    #allocation3 [shape = 's32[1]{0}', space=sflag, size = 0x4, scoped, tag = 'scoped memory for fancy_mlp.1']
    %8 = vsyncpa [#allocation3], 0
    // Predicated region
    $region2: #{fancy_mlp.1} parent=1 // pred_check
      _
    $region3: #{fancy_mlp.1} parent=1 // pred_check_branch
      %10 = sbr.rel (0) target = $region5
    $region4: #{fancy_mlp.1} parent=1 // pred_region
      _
    $region5: #{fancy_mlp.1} parent=1 // pred_fallthru
      _
    // Predicated region
    $region6: #{fancy_mlp.1} parent=1 // pred_check
      _
    $region7: #{fancy_mlp.1} parent=1 // pred_check_branch
      %12 = sbr.rel (0) target = $region9
    $region8: #{fancy_mlp.1} parent=1 // pred_region
      _
    $region9: #{fancy_mlp.1} parent=1 // pred_fallthru
      _
    // Predicated region
    $region10: #{fancy_mlp.1} parent=1 // pred_check
      _
    $region11: #{fancy_mlp.1} parent=1 // pred_check_branch
      %14 = sbr.rel (0) target = $region13
    $region12: #{fancy_mlp.1} parent=1 // pred_region
      _
    $region13: #{fancy_mlp.1} parent=1 // pred_fallthru
      _
    %v15 = vld [vmem:[%s0] sm:$0x3]
    %v16 = vld [vmem:[%s1] sm:$0xff]
    %v17 = vld [vmem:[%s1 + $0x8] sm:$0xff]
    %v18 = vld [vmem:[%s1 + $0x10] sm:$0xf]
    %v19 = vld [vmem:[%s2] sm:$0x1]
    %v20 = vlaneseq
    %v21 = vshrl.u32 %v20, 7
    %v22 = vsub.s32 0, %v21
    %v23 = vrot.slane %v19, %v22
    %vm24 = vcmask 162816
    %v26 = vsel %vm24, %v15, 0
    %vm28 = vcmask 1043456
    %v30 = vsel %vm28, %v18, 0
    %32 = vmatprep.subr.mxu0 0.0
    %33 = vmatpush1.msra.mxu0 %v16
    %34 = vmatprep.subr.mxu0 0.0
    %35 = vmatpush1.msra.mxu0 %v17
    %36 = vmatprep.subr.mxu0 0.0
    %37 = vmatpush1.msra.mxu0 %v30
    %38 = vmatprep.subr.mxu0 0.0
    %39 = vmatpush1.msra.mxu0 0.0
    %40 = vmatprep.subr.mxu0 0.0
    %41 = vmatpush1.msra.mxu0 0.0
    %42 = vmatprep.subr.mxu0 0.0
    %43 = vmatpush1.msra.mxu0 0.0
    %44 = vmatprep.subr.mxu0 0.0
    %45 = vmatpush1.msra.mxu0 0.0
    %46 = vmatprep.subr.mxu0 0.0
    %47 = vmatpush1.msra.mxu0 0.0
    %48 = vmatprep.subr.mxu0 0.0
    %49 = vmatpush1.msra.mxu0 0.0
    %50 = vmatprep.subr.mxu0 0.0
    %51 = vmatpush1.msra.mxu0 0.0
    %52 = vmatprep.subr.mxu0 0.0
    %53 = vmatpush1.msra.mxu0 0.0
    %54 = vmatprep.subr.mxu0 0.0
    %55 = vmatpush1.msra.mxu0 0.0
    %56 = vmatprep.subr.mxu0 0.0
    %57 = vmatpush1.msra.mxu0 0.0
    %58 = vmatprep.subr.mxu0 0.0
    %59 = vmatpush1.msra.mxu0 0.0
    %60 = vmatprep.subr.mxu0 0.0
    %61 = vmatpush1.msra.mxu0 0.0
    %62 = vmatprep.subr.mxu0 0.0
    %63 = vmatpush1.msra.mxu0 0.0
    %64 = vmatprep.subr.mxu0 0.0
    %65 = vmatpush1.msra.mxu0 0.0
    %66 = vmatprep.subr.mxu0 0.0
    %67 = vmatpush1.msra.mxu0 0.0
    %68 = vmatprep.subr.mxu0 0.0
    %69 = vmatpush1.msra.mxu0 0.0
    %70 = vmatprep.subr.mxu0 0.0
    %71 = vmatpush1.msra.mxu0 0.0
    %72 = vmatprep.subr.mxu0 0.0
    %73 = vmatpush1.msra.mxu0 0.0
    %74 = vmatprep.subr.mxu0 0.0
    %75 = vmatpush1.msra.mxu0 0.0
    %76 = vmatprep.subr.mxu0 0.0
    %77 = vmatpush1.msra.mxu0 0.0
    %78 = vmatprep.subr.mxu0 0.0
    %79 = vmatpush1.msra.mxu0 0.0
    %80 = vmatprep.subr.mxu0 0.0
    %81 = vmatpush1.msra.mxu0 0.0
    %82 = vmatprep.subr.mxu0 0.0
    %83 = vmatpush1.msra.mxu0 0.0
    %84 = vmatprep.subr.mxu0 0.0
    %85 = vmatpush1.msra.mxu0 0.0
    %86 = vmatprep.subr.mxu0 0.0
    %87 = vmatpush1.msra.mxu0 0.0
    %88 = vmatprep.subr.mxu0 0.0
    %89 = vmatpush1.msra.mxu0 0.0
    %90 = vmatprep.subr.mxu0 0.0
    %91 = vmatpush1.msra.mxu0 0.0
    %92 = vmatprep.subr.mxu0 0.0
    %93 = vmatpush1.msra.mxu0 0.0
    %94 = vmatprep.subr.mxu0 0.0
    %95 = vmatpush1.msra.mxu0 0.0
    %96 = vmatprep.mubr.f32.mxu0 0.0
    %97 = vmatmul.mubr.f32.gmra.mrb[0].mxu0 %v26
    %v98 = vpop.f32.mrb[0].mxu0
    %v99 = vadd.f32 %v23, %v98
    %v100 = vpop.f32.mrb[0].mxu0
    %101 = vdwg.mxu0
    %v102 = vmax.f32 %v99, 0.0
    %s103 = scalar_lea.vmem %s1, 24
    %v104 = vld [vmem:[%s103] sm:$0xff]
    %v105 = vld [vmem:[%s103 + $0x8] sm:$0xff]
    %v106 = vld [vmem:[%s103 + $0x10] sm:$0xf]
    %v107 = vld [vmem:[%s2 + $0x1] sm:$0x1]
    %v108 = vlaneseq
    %v109 = vshrl.u32 %v108, 7
    %v110 = vsub.s32 0, %v109
    %v111 = vrot.slane %v107, %v110
    %v113 = vsel %vm24, %v102, 0
    %v116 = vsel %vm28, %v106, 0
    %118 = vmatprep.subr.mxu0 0.0
    %119 = vmatpush1.msra.mxu0 %v104
    %120 = vmatprep.subr.mxu0 0.0
    %121 = vmatpush1.msra.mxu0 %v105
    %122 = vmatprep.subr.mxu0 0.0
    %123 = vmatpush1.msra.mxu0 %v116
    %124 = vmatprep.subr.mxu0 0.0
    %125 = vmatpush1.msra.mxu0 0.0
    %126 = vmatprep.subr.mxu0 0.0
    %127 = vmatpush1.msra.mxu0 0.0
    %128 = vmatprep.subr.mxu0 0.0
    %129 = vmatpush1.msra.mxu0 0.0
    %130 = vmatprep.subr.mxu0 0.0
    %131 = vmatpush1.msra.mxu0 0.0
    %132 = vmatprep.subr.mxu0 0.0
    %133 = vmatpush1.msra.mxu0 0.0
    %134 = vmatprep.subr.mxu0 0.0
    %135 = vmatpush1.msra.mxu0 0.0
    %136 = vmatprep.subr.mxu0 0.0
    %137 = vmatpush1.msra.mxu0 0.0
    %138 = vmatprep.subr.mxu0 0.0
    %139 = vmatpush1.msra.mxu0 0.0
    %140 = vmatprep.subr.mxu0 0.0
    %141 = vmatpush1.msra.mxu0 0.0
    %142 = vmatprep.subr.mxu0 0.0
    %143 = vmatpush1.msra.mxu0 0.0
    %144 = vmatprep.subr.mxu0 0.0
    %145 = vmatpush1.msra.mxu0 0.0
    %146 = vmatprep.subr.mxu0 0.0
    %147 = vmatpush1.msra.mxu0 0.0
    %148 = vmatprep.subr.mxu0 0.0
    %149 = vmatpush1.msra.mxu0 0.0
    %150 = vmatprep.subr.mxu0 0.0
    %151 = vmatpush1.msra.mxu0 0.0
    %152 = vmatprep.subr.mxu0 0.0
    %153 = vmatpush1.msra.mxu0 0.0
    %154 = vmatprep.subr.mxu0 0.0
    %155 = vmatpush1.msra.mxu0 0.0
    %156 = vmatprep.subr.mxu0 0.0
    %157 = vmatpush1.msra.mxu0 0.0
    %158 = vmatprep.subr.mxu0 0.0
    %159 = vmatpush1.msra.mxu0 0.0
    %160 = vmatprep.subr.mxu0 0.0
    %161 = vmatpush1.msra.mxu0 0.0
    %162 = vmatprep.subr.mxu0 0.0
    %163 = vmatpush1.msra.mxu0 0.0
    %164 = vmatprep.subr.mxu0 0.0
    %165 = vmatpush1.msra.mxu0 0.0
    %166 = vmatprep.subr.mxu0 0.0
    %167 = vmatpush1.msra.mxu0 0.0
    %168 = vmatprep.subr.mxu0 0.0
    %169 = vmatpush1.msra.mxu0 0.0
    %170 = vmatprep.subr.mxu0 0.0
    %171 = vmatpush1.msra.mxu0 0.0
    %172 = vmatprep.subr.mxu0 0.0
    %173 = vmatpush1.msra.mxu0 0.0
    %174 = vmatprep.subr.mxu0 0.0
    %175 = vmatpush1.msra.mxu0 0.0
    %176 = vmatprep.subr.mxu0 0.0
    %177 = vmatpush1.msra.mxu0 0.0
    %178 = vmatprep.subr.mxu0 0.0
    %179 = vmatpush1.msra.mxu0 0.0
    %180 = vmatprep.subr.mxu0 0.0
    %181 = vmatpush1.msra.mxu0 0.0
    %182 = vmatprep.mubr.f32.mxu0 0.0
    %183 = vmatmul.mubr.f32.gmra.mrb[0].mxu0 %v113
    %v184 = vpop.f32.mrb[0].mxu0
    %v185 = vadd.f32 %v111, %v184
    %v186 = vpop.f32.mrb[0].mxu0
    %187 = vdwg.mxu0
    %v188 = vmul.f32 %v185, %v185
    %vm189 = vcmask 156672
    %v190 = vsel %vm189, %v188, 0.0
    %191 = vadd.xlane.f32.xlu0 %v190
    %v192 = vpop.xlane.xlu0 %191
    %v193 = vrot.slane %v192, 4
    %v194 = vadd.f32 %v192, %v193
    %v195 = vrot.slane %v194, 2
    %v196 = vadd.f32 %v194, %v195
    %v197 = vrot.slane %v196, 1
    %v198 = vadd.f32 %v196, %v197
    %s199 = vtos %v198
    %v200 = vstv %s199
    %v202 = vshra.s32 %v200, 23
    %v203 = vand.u32 %v202, 255
    %v204 = vsub.s32 %v203, 127
    %v205 = vand.u32 %v200, 8388607
    %vm206 = vcmp.ne.s32.totalorder %v205, 0
    %v207 = vshra.s32 %v204, 1
    %v208 = vand.u32 %v204, 1
    %vm209 = vcmp.ne.s32.totalorder %v208, 0
    %vm210 = vmor %vm209, %vm206
    %v211 = vsel %vm210, 1, 0
    %v212 = vadd.s32 %v207, %v211
    %vm213 = vcmp.lt.s32.totalorder %v204, 0
    %v214 = vsel %vm213, 0, %v212
    %v215 = vsub.s32 127, %v214
    %v216 = vshll.u32 %v215, 23
    %v218 = vmul.f32 %v200, %v216
    %v219 = vmul.f32 %v218, %v216
    %vm220 = vcmp.lt.f32.partialorder %v219, 0.64
    %v221 = vmul.f32 %v216, 10.0
    %v222 = vsel %vm220, %v221, %v216
    %v223 = vsel %vm189, %v185, 0.0
    %224 = vadd.xlane.f32.xlu0 %v223
    %v225 = vpop.xlane.xlu0 %224
    %v226 = vrot.slane %v225, 4
    %v227 = vadd.f32 %v225, %v226
    %v228 = vrot.slane %v227, 2
    %v229 = vadd.f32 %v227, %v228
    %v230 = vrot.slane %v229, 1
    %v231 = vadd.f32 %v229, %v230
    %s232 = vtos %v231
    %v233 = vstv %s232
    %v234 = vmul.f32 %v233, %v222
    %vm235 = vcmask 0
    %236 = vst.msk [vmem:[#allocation2] sm:$0x1] %vm235, %v234
    // Predicated region
    $region14: #{fancy_mlp.1} parent=1 // pred_check
      _
    $region15: #{fancy_mlp.1} parent=1 // pred_check_branch
      %238 = sbr.rel (0) target = $region17
    $region16: #{fancy_mlp.1} parent=1 // pred_region
      %s240 = ssub.s32 16, 16
      %241 = vsyncadd [#allocation3], %s240
      %s243 = sshll.u32 [#allocation2], 4
      %s244 = int_to_ptr.vmem [resolvable:$true] %s243
      %246 = dma.vmem_to_hbm [thread:$0]  %s244, 16, %s3, [#allocation3]
    $region17: #{fancy_mlp.1} parent=1 // pred_fallthru
      _
    // Predicated region
    $region18: #{fancy_mlp.1} parent=1 // pred_check
      _
    $region19: #{fancy_mlp.1} parent=1 // pred_check_branch
      %248 = sbr.rel (0) target = $region21
    $region20: #{fancy_mlp.1} parent=1 // pred_region
      %249 = dma.done [#allocation3], 16
    $region21: #{fancy_mlp.1} parent=1 // pred_fallthru
      _
    %250 = vsyncpa [#allocation3], 1

</llo_original>
